<compile_context>
chip_gen: v6e
topology: v6e:2x2x1
jax: 0.10.0
libtpu: 0.0.40
codegen_flags: <defaults>
</compile_context>

<pallas_src>
import jax
import jax.numpy as jnp
from jax import lax
from jax.experimental import pallas as pl
from jax.experimental.pallas import tpu as pltpu


# ---------------------------------------------------------------------------
# Tiling helpers
# ---------------------------------------------------------------------------

_FUSED_PER_IMAGE_LIMIT = 4 * 2**20     # max bytes of one (C, HW) slab on the fused path
_TWO_PASS_HW_TILE = 2048               # lane tile (multiple of 128) for the two-pass path
_MIN_VMEM_LIMIT = 16 * 2**20
_MAX_VMEM_LIMIT = 64 * 2**20


def _target_block_bytes():
    # ~1 MiB blocks already reach ~85% of the HBM roofline; only nudge larger on
    # the 128 MiB-VMEM parts (v5e/v6e).  v7x (64 MiB physical) stays at 1 MiB.
    try:
        if pltpu.get_tpu_info().vmem_capacity_bytes >= 100 * 2**20:
            return 2 * 2**20
    except Exception:
        pass
    return 1 * 2**20


def _pick_batch_block(n, per_image_bytes, target_bytes, min_grid_len=4):
    """Largest divisor of n whose block stays <= target_bytes, preferring a grid
    length >= min_grid_len (>= 2 steps per v7x TensorCore) over bigger blocks."""
    divisors = [d for d in range(1, n + 1) if n % d == 0]
    for need_grid in (min_grid_len, 2, 1):
        cands = [d for d in divisors
                 if d * per_image_bytes <= target_bytes and (n // d) >= need_grid]
        if cands:
            return max(cands)
    return 1


def _vmem_limit(*buffer_bytes):
    total = sum(int(b) for b in buffer_bytes) + 2 * 2**20   # scheduler / scratch margin
    return int(min(max(total, _MIN_VMEM_LIMIT), _MAX_VMEM_LIMIT))


# ---------------------------------------------------------------------------
# Fused single-pass kernel: GAP + FC + ReLU + FC + sigmoid + rescale
# ---------------------------------------------------------------------------

def _make_fused_kernel(inv_hw):
    def kernel(x_ref, wd_ref, bd_ref, wu_ref, bu_ref, o_ref):
        # x_ref / o_ref: (Nb, C, HW) in the activation's native dtype.
        # (1) GAP with f32 accumulation.  The upcast is consumed directly by the
        #     lane reduce; no block-sized f32 value stays live past this line.
        gap = jnp.sum(x_ref[...].astype(jnp.float32), axis=-1) * inv_hw        # (Nb, C)
        # (2) 1x1 conv "down" + ReLU, 1x1 conv "up" + sigmoid (tiny, hidden under DMA).
        z = jnp.dot(gap, wd_ref[...], preferred_element_type=jnp.float32) + bd_ref[...]
        z = jnp.maximum(z, 0.0)
        s = jnp.dot(z, wu_ref[...], preferred_element_type=jnp.float32) + bu_ref[...]
        scale = jax.nn.sigmoid(s)                                              # (Nb, C) f32
        # (3) Rescale: re-read x in its native dtype, multiply by the scale cast
        #     to that dtype (bf16 VALU on v6e/v7x; per-vreg f32 emulation on v5e).
        o_ref[...] = x_ref[...] * scale.astype(o_ref.dtype)[:, :, None]
    return kernel


def _se_fused(x, wd, bd, wu, bu, *, hw):
    N, C, HWs = x.shape            # HWs == stored spatial extent (equals hw unless padded)
    I = wd.shape[1]
    dtype = x.dtype
    itemsize = jnp.dtype(dtype).itemsize
    padded = HWs != hw

    per_image_bytes = C * HWs * itemsize
    nb = _pick_batch_block(N, per_image_bytes, target_bytes=_target_block_bytes())
    grid = (N // nb,)

    blk = nb * C * HWs * itemsize
    w_bytes = 4 * (C * I + I + I * C + C)
    vmem = _vmem_limit(4 * blk,              # in + out blocks, double buffered
                       nb * C * HWs * 4,     # transient f32 headroom for the GAP reduce
                       2 * w_bytes)

    return pl.pallas_call(
        _make_fused_kernel(1.0 / hw),
        out_shape=jax.ShapeDtypeStruct((N, C, HWs), dtype),
        grid_spec=pltpu.PrefetchScalarGridSpec(
            num_scalar_prefetch=0,
            grid=grid,
            in_specs=[
                pl.BlockSpec((nb, C, HWs), lambda n: (n, 0, 0)),    # x block (Nb images)
                # TODO(synk): weight/bias specs could be single-buffered (constant
                # block index); the saving is a few KiB of VMEM, so left default.
                pl.BlockSpec((C, I), lambda n: (0, 0)),             # w_down^T
                pl.BlockSpec((1, I), lambda n: (0, 0)),             # b_down
                pl.BlockSpec((I, C), lambda n: (0, 0)),             # w_up^T
                pl.BlockSpec((1, C), lambda n: (0, 0)),             # b_up
            ],
            out_specs=pl.BlockSpec((nb, C, HWs), lambda n: (n, 0, 0)),
        ),
        compiler_params=pltpu.CompilerParams(
            dimension_semantics=("parallel",),
            vmem_limit_bytes=vmem),
        # Alias only when x is a fresh padded intermediate; aliasing a reshape of
        # the caller's non-donated activation would force a defensive HBM copy.
        input_output_aliases=({0: 0} if padded else {}),
    )(x, wd, bd, wu, bu)


# ---------------------------------------------------------------------------
# Two-pass fallback: (1) tiled GAP + FC + sigmoid -> scales, (2) tiled rescale
# ---------------------------------------------------------------------------

def _make_gap_scale_kernel(inv_hw, hw, t_hw):
    masked_tail = (hw % t_hw) != 0

    def kernel(x_ref, wd_ref, bd_ref, wu_ref, bu_ref, s_ref, acc_ref):
        h = pl.program_id(1)

        @pl.when(h == 0)
        def _():
            acc_ref[...] = jnp.zeros_like(acc_ref)

        xb = x_ref[...].astype(jnp.float32)                       # (Nb, C, T)
        if masked_tail:
            # Boundary block: zero the out-of-range lanes before accumulating.
            col = h * t_hw + lax.broadcasted_iota(jnp.int32, xb.shape, 2)
            xb = jnp.where(col < hw, xb, 0.0)
        acc_ref[...] += jnp.sum(xb, axis=-1)

        @pl.when(h == pl.num_programs(1) - 1)
        def _():
            gap = acc_ref[...] * inv_hw                           # (Nb, C)
            z = jnp.dot(gap, wd_ref[...], preferred_element_type=jnp.float32) + bd_ref[...]
            z = jnp.maximum(z, 0.0)
            s = jnp.dot(z, wu_ref[...], preferred_element_type=jnp.float32) + bu_ref[...]
            s_ref[...] = jax.nn.sigmoid(s)[:, :, None]            # (Nb, C, 1)
    return kernel


def _rescale_kernel(x_ref, s_ref, o_ref):
    o_ref[...] = x_ref[...] * s_ref[...].astype(o_ref.dtype)


def _se_two_pass(x, wd, bd, wu, bu, *, hw, hw_tile=None):
    """Fallback for images whose (C, HW) slab does not fit the fused VMEM budget.
    Costs ~1.5x the HBM traffic of the fused path but tiles freely in 2-D, keeping
    both v7x TensorCores busy even at small N."""
    N, C, HW = x.shape
    I = wd.shape[1]
    dtype = x.dtype
    itemsize = jnp.dtype(dtype).itemsize

    if hw_tile is None:
        hw_tile = HW if HW <= _TWO_PASS_HW_TILE else _TWO_PASS_HW_TILE
    t = hw_tile
    g_hw = pl.cdiv(HW, t)

    nb = _pick_batch_block(N, C * t * itemsize,
                           target_bytes=_target_block_bytes(), min_grid_len=2)
    g_n = N // nb

    blk = nb * C * t * itemsize
    w_bytes = 4 * (C * I + I + I * C + C)
    vmem1 = _vmem_limit(2 * blk, nb * C * t * 4, 4 * nb * C * 4, 2 * w_bytes)
    vmem2 = _vmem_limit(4 * blk, 4 * nb * C * 4)

    # Pass 1: GAP (f32 accumulation over spatial tiles) + FC + sigmoid -> scales.
    scales = pl.pallas_call(
        _make_gap_scale_kernel(1.0 / hw, HW, t),
        out_shape=jax.ShapeDtypeStruct((N, C, 1), jnp.float32),
        grid_spec=pltpu.PrefetchScalarGridSpec(
            num_scalar_prefetch=0,
            grid=(g_n, g_hw),
            in_specs=[
                pl.BlockSpec((nb, C, t), lambda n, h: (n, 0, h)),
                pl.BlockSpec((C, I), lambda n, h: (0, 0)),
                pl.BlockSpec((1, I), lambda n, h: (0, 0)),
                pl.BlockSpec((I, C), lambda n, h: (0, 0)),
                pl.BlockSpec((1, C), lambda n, h: (0, 0)),
            ],
            out_specs=pl.BlockSpec((nb, C, 1), lambda n, h: (n, 0, 0)),
            scratch_shapes=[pltpu.VMEM((nb, C), jnp.float32)],
        ),
        compiler_params=pltpu.CompilerParams(
            dimension_semantics=("parallel", "arbitrary"),
            vmem_limit_bytes=vmem1),
    )(x, wd, bd, wu, bu)

    # Pass 2: per-channel broadcast-multiply on a fully parallel 2-D grid.
    out = pl.pallas_call(
        _rescale_kernel,
        out_shape=jax.ShapeDtypeStruct((N, C, HW), dtype),
        grid_spec=pltpu.PrefetchScalarGridSpec(
            num_scalar_prefetch=0,
            grid=(g_n, g_hw),
            in_specs=[
                pl.BlockSpec((nb, C, t), lambda n, h: (n, 0, h)),
                pl.BlockSpec((nb, C, 1), lambda n, h: (n, 0, 0)),
            ],
            out_specs=pl.BlockSpec((nb, C, t), lambda n, h: (n, 0, h)),
        ),
        compiler_params=pltpu.CompilerParams(
            dimension_semantics=("parallel", "parallel"),
            vmem_limit_bytes=vmem2),
    )(x, scales)
    return out


# ---------------------------------------------------------------------------
# Public wrapper
# ---------------------------------------------------------------------------

def se_block(x_nchw, w_down, b_down, w_up, b_up, *, force_two_pass=False, hw_tile=None):
    """SEBlock forward.

    x_nchw: (N, C, H, W) in any float dtype (bf16/f16/f32) — streamed natively.
    w_down: (I, C) or (I, C, 1, 1); b_down: (I,); w_up: (C, I) or (C, I, 1, 1); b_up: (C,).
    Returns (N, C, H, W) in x_nchw's dtype.
    """
    N, C, H, W = x_nchw.shape
    HW = H * W
    dtype = x_nchw.dtype
    itemsize = jnp.dtype(dtype).itemsize

    w_down = jnp.asarray(w_down, jnp.float32).reshape(-1, C)     # (I, C)
    I = w_down.shape[0]
    w_up = jnp.asarray(w_up, jnp.float32).reshape(C, I)          # (C, I)

    # Tiny, always-VMEM-resident f32 weights, pre-transposed for (Nb,C)@(C,I) / (Nb,I)@(I,C).
    wd = w_down.T                                                # (C, I)
    wu = w_up.T                                                  # (I, C)
    bd = jnp.asarray(b_down, jnp.float32).reshape(1, I)
    bu = jnp.asarray(b_up, jnp.float32).reshape(1, C)

    x = x_nchw.reshape(N, C, HW)

    per_image_bytes = C * HW * itemsize
    if force_two_pass or per_image_bytes > _FUSED_PER_IMAGE_LIMIT:
        out = _se_two_pass(x, wd, bd, wu, bu, hw=HW, hw_tile=hw_tile)
        return out.reshape(N, C, H, W)

    # Fused single-pass path.  HBM-side spatial padding is only worth it for
    # genuinely tiny spatial sizes; otherwise the full, unpadded HW is used
    # directly as the (exempt) last block dim, accepting one masked tail vreg.
    # TODO(synk): a channels-last (N, H*W, C) layout would avoid the masked-tail
    # question entirely when the producer can supply it.
    if HW < 256 and HW % 128 != 0:
        HWp = ((HW + 127) // 128) * 128
        x_p = jnp.pad(x, ((0, 0), (0, 0), (0, HWp - HW)))
        out = _se_fused(x_p, wd, bd, wu, bu, hw=HW)[:, :, :HW]
    else:
        out = _se_fused(x, wd, bd, wu, bu, hw=HW)
    return out.reshape(N, C, H, W)


def se_block_ref(x, w_down, b_down, w_up, b_up):
    """Pure-JAX f32 reference mirroring the PyTorch forward."""
    x = x.astype(jnp.float32)
    C = x.shape[1]
    wd = jnp.asarray(w_down, jnp.float32).reshape(-1, C)
    wu = jnp.asarray(w_up, jnp.float32).reshape(C, -1)
    gap = jnp.mean(x, axis=(2, 3))
    z = jnp.maximum(gap @ wd.T + jnp.asarray(b_down, jnp.float32), 0.0)
    s = jax.nn.sigmoid(z @ wu.T + jnp.asarray(b_up, jnp.float32))
    return x * s[:, :, None, None]


if __name__ == "__main__":
    key = jax.random.PRNGKey(0)
    k_x, k_x2, k_x3, k_wd, k_bd, k_wu, k_bu = jax.random.split(key, 7)

    N, C, INTERNAL = 2, 4, 8
    bound_d = 1.0 / (C ** 0.5)
    bound_u = 1.0 / (INTERNAL ** 0.5)
    w_down = jax.random.uniform(k_wd, (INTERNAL, C), jnp.float32, -bound_d, bound_d)
    b_down = jax.random.uniform(k_bd, (INTERNAL,), jnp.float32, -bound_d, bound_d)
    w_up = jax.random.uniform(k_wu, (C, INTERNAL), jnp.float32, -bound_u, bound_u)
    b_up = jax.random.uniform(k_bu, (C,), jnp.float32, -bound_u, bound_u)

    # 1) Fused path, f32, HW = 256 (unpadded, lane-aligned, unmasked stores).
    x = jax.random.normal(k_x, (N, C, 16, 16), dtype=jnp.float32)
    out = jax.block_until_ready(se_block(x, w_down, b_down, w_up, b_up))
    ref = se_block_ref(x, w_down, b_down, w_up, b_up)
    assert out.shape == x.shape and out.dtype == x.dtype
    assert jnp.allclose(out, ref, atol=1e-4, rtol=1e-4), "fused f32 mismatch vs reference"

    # 2) Fused path, bf16 streaming (halved HBM traffic; f32 GAP/FC/sigmoid inside).
    x_bf16 = x.astype(jnp.bfloat16)
    out_bf16 = jax.block_until_ready(se_block(x_bf16, w_down, b_down, w_up, b_up))
    ref_bf16 = se_block_ref(x_bf16, w_down, b_down, w_up, b_up)
    assert out_bf16.dtype == jnp.bfloat16
    assert jnp.allclose(out_bf16.astype(jnp.float32), ref_bf16,
                        atol=5e-2, rtol=5e-2), "fused bf16 mismatch vs reference"

    # 3) Fused path, tiny HW (7x7 = 49): exercises the padded / aliased branch.
    x_tiny = jax.random.normal(k_x2, (N, C, 7, 7), dtype=jnp.float32)
    out_tiny = jax.block_until_ready(se_block(x_tiny, w_down, b_down, w_up, b_up))
    ref_tiny = se_block_ref(x_tiny, w_down, b_down, w_up, b_up)
    assert jnp.allclose(out_tiny, ref_tiny, atol=1e-4, rtol=1e-4), "tiny-HW mismatch vs reference"

    # 4) Two-pass fallback (forced), HW = 400 with a 128-lane tile: exercises the
    #    masked partial tail tile and the 2-D parallel rescale grid.
    x_big = jax.random.normal(k_x3, (N, C, 20, 20), dtype=jnp.float32)
    out_tp = jax.block_until_ready(
        se_block(x_big, w_down, b_down, w_up, b_up, force_two_pass=True, hw_tile=128))
    ref_tp = se_block_ref(x_big, w_down, b_down, w_up, b_up)
    assert jnp.allclose(out_tp, ref_tp, atol=1e-4, rtol=1e-4), "two-pass mismatch vs reference"

    print("KERNEL_OK")
</pallas_src>

<mosaic_0001>
module attributes {stable_mosaic.version = 11 : i64} {
  func.func @kernel(%arg0: i32, %arg1: memref<1x4x256xf32, #tpu.memory_space<vmem>>, %arg2: memref<4x8xf32, #tpu.memory_space<vmem>>, %arg3: memref<1x8xf32, #tpu.memory_space<vmem>>, %arg4: memref<8x4xf32, #tpu.memory_space<vmem>>, %arg5: memref<1x4xf32, #tpu.memory_space<vmem>>, %arg6: memref<1x4x256xf32, #tpu.memory_space<vmem>>) attributes {dimension_semantics = [#tpu.dimension_semantics<parallel>], iteration_bounds = array<i64: 2>, scalar_prefetch = 0 : i64, scratch_operands = 0 : i64, tpu.core_type = #tpu.core_type<tc>, window_params = [{transform_indices = @transform_0, window_bounds = array<i64: 1, 4, 256>}, {pipeline_mode = #tpu.pipeline_mode<synchronous>, transform_indices = @transform_1, window_bounds = array<i64: 4, 8>}, {pipeline_mode = #tpu.pipeline_mode<synchronous>, transform_indices = @transform_2, window_bounds = array<i64: 1, 8>}, {pipeline_mode = #tpu.pipeline_mode<synchronous>, transform_indices = @transform_3, window_bounds = array<i64: 8, 4>}, {pipeline_mode = #tpu.pipeline_mode<synchronous>, transform_indices = @transform_4, window_bounds = array<i64: 1, 4>}, {transform_indices = @transform_5, window_bounds = array<i64: 1, 4, 256>}]} {
    %c0 = arith.constant 0 : index
    %c0_0 = arith.constant 0 : index
    %c0_1 = arith.constant 0 : index
    %0 = vector.load %arg1[%c0, %c0_0, %c0_1] : memref<1x4x256xf32, #tpu.memory_space<vmem>>, vector<1x4x256xf32>
    %cst = arith.constant dense<0.000000e+00> : vector<1x4xf32>
    %1 = vector.multi_reduction <add>, %0, %cst [2] : vector<1x4x256xf32> to vector<1x4xf32>
    %cst_2 = arith.constant 3.906250e-03 : f32
    %2 = vector.broadcast %cst_2 : f32 to vector<1x4xf32>
    %3 = arith.mulf %1, %2 : vector<1x4xf32>
    %c0_3 = arith.constant 0 : index
    %c0_4 = arith.constant 0 : index
    %4 = vector.load %arg2[%c0_3, %c0_4] : memref<4x8xf32, #tpu.memory_space<vmem>>, vector<4x8xf32>
    %cst_5 = arith.constant dense<0.000000e+00> : vector<1x8xf32>
    %5 = tpu.matmul %3, %4, %cst_5 {dimension_numbers = #tpu.dot_dimension_numbers<[1], [0], [0], [1], [0, 0, 1, 1], [], []>} : vector<1x4xf32>, vector<4x8xf32>, vector<1x8xf32> -> vector<1x8xf32>
    %c0_6 = arith.constant 0 : index
    %c0_7 = arith.constant 0 : index
    %6 = vector.load %arg3[%c0_6, %c0_7] : memref<1x8xf32, #tpu.memory_space<vmem>>, vector<1x8xf32>
    %7 = arith.addf %5, %6 : vector<1x8xf32>
    %cst_8 = arith.constant 0.000000e+00 : f32
    %8 = vector.broadcast %cst_8 : f32 to vector<1x8xf32>
    %9 = arith.maximumf %7, %8 : vector<1x8xf32>
    %c0_9 = arith.constant 0 : index
    %c0_10 = arith.constant 0 : index
    %10 = vector.load %arg4[%c0_9, %c0_10] : memref<8x4xf32, #tpu.memory_space<vmem>>, vector<8x4xf32>
    %cst_11 = arith.constant dense<0.000000e+00> : vector<1x4xf32>
    %11 = tpu.matmul %9, %10, %cst_11 {dimension_numbers = #tpu.dot_dimension_numbers<[1], [0], [0], [1], [0, 0, 1, 1], [], []>} : vector<1x8xf32>, vector<8x4xf32>, vector<1x4xf32> -> vector<1x4xf32>
    %c0_12 = arith.constant 0 : index
    %c0_13 = arith.constant 0 : index
    %12 = vector.load %arg5[%c0_12, %c0_13] : memref<1x4xf32, #tpu.memory_space<vmem>>, vector<1x4xf32>
    %13 = arith.addf %11, %12 : vector<1x4xf32>
    %14 = arith.negf %13 : vector<1x4xf32>
    %15 = math.exp %14 : vector<1x4xf32>
    %cst_14 = arith.constant 1.000000e+00 : f32
    %16 = vector.broadcast %cst_14 : f32 to vector<1x4xf32>
    %17 = arith.addf %16, %15 : vector<1x4xf32>
    %18 = arith.divf %16, %17 : vector<1x4xf32>
    %c0_15 = arith.constant 0 : index
    %c0_16 = arith.constant 0 : index
    %c0_17 = arith.constant 0 : index
    %19 = vector.load %arg1[%c0_15, %c0_16, %c0_17] : memref<1x4x256xf32, #tpu.memory_space<vmem>>, vector<1x4x256xf32>
    %20 = vector.shape_cast %18 : vector<1x4xf32> to vector<1x4x1xf32>
    %21 = vector.broadcast %20 : vector<1x4x1xf32> to vector<1x4x256xf32>
    %22 = arith.mulf %19, %21 : vector<1x4x256xf32>
    %c0_18 = arith.constant 0 : index
    %c0_19 = arith.constant 0 : index
    %c0_20 = arith.constant 0 : index
    %23 = vector.load %arg6[%c0_18, %c0_19, %c0_20] : memref<1x4x256xf32, #tpu.memory_space<vmem>>, vector<1x4x256xf32>
    tpu.vector_store %arg6[%c0_18, %c0_19, %c0_20], %22 {strides = array<i32>} : memref<1x4x256xf32, #tpu.memory_space<vmem>>, vector<1x4x256xf32>,
    return
  }
  func.func @transform_0(%arg0: i32) -> (i32, i32, i32) {
    %c0_i32 = arith.constant 0 : i32
    %c0_i32_0 = arith.constant 0 : i32
    %c0_i32_1 = arith.constant 0 : i32
    return %arg0, %c0_i32, %c0_i32_0 : i32, i32, i32
  }
  func.func @transform_1(%arg0: i32) -> (i32, i32) {
    %c0_i32 = arith.constant 0 : i32
    %c0_i32_0 = arith.constant 0 : i32
    %c0_i32_1 = arith.constant 0 : i32
    return %c0_i32, %c0_i32_0 : i32, i32
  }
  func.func @transform_2(%arg0: i32) -> (i32, i32) {
    %c0_i32 = arith.constant 0 : i32
    %c0_i32_0 = arith.constant 0 : i32
    %c0_i32_1 = arith.constant 0 : i32
    return %c0_i32, %c0_i32_0 : i32, i32
  }
  func.func @transform_3(%arg0: i32) -> (i32, i32) {
    %c0_i32 = arith.constant 0 : i32
    %c0_i32_0 = arith.constant 0 : i32
    %c0_i32_1 = arith.constant 0 : i32
    return %c0_i32, %c0_i32_0 : i32, i32
  }
  func.func @transform_4(%arg0: i32) -> (i32, i32) {
    %c0_i32 = arith.constant 0 : i32
    %c0_i32_0 = arith.constant 0 : i32
    %c0_i32_1 = arith.constant 0 : i32
    return %c0_i32, %c0_i32_0 : i32, i32
  }
  func.func @transform_5(%arg0: i32) -> (i32, i32, i32) {
    %c0_i32 = arith.constant 0 : i32
    %c0_i32_0 = arith.constant 0 : i32
    %c0_i32_1 = arith.constant 0 : i32
    return %arg0, %c0_i32, %c0_i32_0 : i32, i32, i32
  }
}

</mosaic_0001>

<llo_original>
// kernel: tpu_custom_call.1
$region0: #{tpu_custom_call.1}
  #allocation0 [shape = 'u32[]', space=smem, size = 0x4, offset = 0x4, fixed_abs, tag = 'smem constant byte address 0x4 - core index']
  #allocation1 [shape = 'u32[144,128]{1,0:T(1,128)}', space=vmem, size = 0x12000, scoped, tag = 'internal scratch']
  %s0 = inlined_call_operand.hbm [shape: f32[2,4,256], index: 0, kind: input, shape index: {}]
  %s1 = inlined_call_operand.vmem [shape: f32[4,8], index: 1, kind: input, shape index: {}]
  %s2 = inlined_call_operand.vmem [shape: f32[1,8], index: 2, kind: input, shape index: {}]
  %s3 = inlined_call_operand.vmem [shape: f32[8,4], index: 3, kind: input, shape index: {}]
  %s4 = inlined_call_operand.vmem [shape: f32[1,4], index: 4, kind: input, shape index: {}]
  %s5 = inlined_call_operand.hbm [shape: f32[2,4,256], index: 5, kind: output, shape index: {}]
  %s6 = sld [smem:[#allocation0]]
  $region57: #{tpu_custom_call.1} parent=0
    _
  %s8 = ssub.s32 1, %s6
  %s9 = scalar_select 0, %s8, %s6
  $region1: #{tpu_custom_call.1} parent=0
    #allocation2 [shape = 'u8[8192]{0}', space=vmem, size = 0x2000, scoped, tag = 'input window, operand 0']
    #allocation3 [shape = 's32[2]{0}', space=sflag, size = 0x8, scoped, tag = 'scoped memory for tpu_custom_call.1']
    #allocation4 [shape = 's32[2]{0}', space=sflag, size = 0x8, scoped, tag = 'scoped memory for tpu_custom_call.1']
    #allocation5 [shape = 'u8[8192]{0}', space=vmem, size = 0x2000, scoped, tag = 'output window, operand 0']
    %10 = vsyncpa [#allocation3], 0
    %s11 = scalar_lea.sflag [#allocation3], 1
    %12 = vsyncpa %s11, 0
    %13 = vsyncpa [#allocation4], 0
    %s14 = scalar_lea.sflag [#allocation4], 1
    %15 = vsyncpa %s14, 0
    loop: start=0, step=1, limit=4
    $region2: #{tpu_custom_call.1} parent=1 // loop_pre_header
      _
    $region3: #{tpu_custom_call.1} parent=1 // loop_header
      %s17 = sphi 0, %s21
      %p18 = scmp.ge.s32.totalorder %s17, 4
      %s27 = sphi 0, %s29
      %s30 = sphi 0, %s27
      %s31 = sphi 0, %s30
      %s47 = sphi 0, %s31
      %s51 = sphi 0, %s51
      %s53 = sphi 0, %s51
      %s54 = sphi 0, %s53
      %s68 = sphi 0, %s54
      %s72 = sphi 0, %s72
      %s74 = sphi 0, %s72
      %s75 = sphi 0, %s74
      %s89 = sphi 0, %s75
      %s93 = sphi 0, %s93
      %s95 = sphi 0, %s93
      %s96 = sphi 0, %s95
      %s110 = sphi 0, %s96
      %s114 = sphi 0, %s114
      %s116 = sphi 0, %s114
      %s117 = sphi 0, %s116
      %s131 = sphi 0, %s117
      %s137 = sphi 0, %s139
      %s140 = sphi 0, %s137
      %s141 = sphi 0, %s140
      %s157 = sphi 0, %s141
    $region4: #{tpu_custom_call.1} parent=1 // loop_header_branch
      %20 = sbr.rel (%p18) target = $region8
    $region5: #{tpu_custom_call.1} parent=1 // loop_body
      %s22 = ssub.s32 %s17, 1
      %s23 = ssub.s32 %s17, 2
      %s24 = sadd.s32 %s17, 1
      %s25 = ssub.s32 %s17, %s24
      %p26 = scmp.eq.s32.totalorder %s25, 0
      %s28 = sadd.s32 %s27, 1
      %s29 = scalar_select %p26, %s27, %s28
      %p32 = pneg %p26
      %p33 = scmp.eq.s32.totalorder %s17, 1
      %p34 = por %p32, %p33
      %p35 = scmp.ne.s32.totalorder %s27, %s30
      %p36 = scmp.eq.s32.totalorder %s17, 0
      %p37 = por %p35, %p36
      %p38 = scmp.ne.s32.totalorder %s27, %s30
      %p39 = scmp.eq.s32.totalorder %s22, 1
      %p40 = por %p38, %p39
      %p41 = scmp.ne.s32.totalorder %s30, %s31
      %p42 = scmp.eq.s32.totalorder %s22, 0
      %p43 = por %p41, %p42
      %p44 = scmp.ne.s32.totalorder %s30, %s31
      %p45 = scmp.eq.s32.totalorder %s23, 1
      %p46 = por %p44, %p45
      %p48 = scmp.ne.s32.totalorder %s31, %s47
      %p49 = scmp.eq.s32.totalorder %s23, 0
      %p50 = por %p48, %p49
      %s52 = sadd.s32 %s51, 1
      %p55 = scmp.eq.s32.totalorder %s17, 1
      %p56 = scmp.ne.s32.totalorder %s51, %s53
      %p57 = scmp.eq.s32.totalorder %s17, 0
      %p58 = por %p56, %p57
      %p59 = scmp.ne.s32.totalorder %s51, %s53
      %p60 = scmp.eq.s32.totalorder %s22, 1
      %p61 = por %p59, %p60
      %p62 = scmp.ne.s32.totalorder %s53, %s54
      %p63 = scmp.eq.s32.totalorder %s22, 0
      %p64 = por %p62, %p63
      %p65 = scmp.ne.s32.totalorder %s53, %s54
      %p66 = scmp.eq.s32.totalorder %s23, 1
      %p67 = por %p65, %p66
      %p69 = scmp.ne.s32.totalorder %s54, %s68
      %p70 = scmp.eq.s32.totalorder %s23, 0
      %p71 = por %p69, %p70
      %s73 = sadd.s32 %s72, 1
      %p76 = scmp.eq.s32.totalorder %s17, 1
      %p77 = scmp.ne.s32.totalorder %s72, %s74
      %p78 = scmp.eq.s32.totalorder %s17, 0
      %p79 = por %p77, %p78
      %p80 = scmp.ne.s32.totalorder %s72, %s74
      %p81 = scmp.eq.s32.totalorder %s22, 1
      %p82 = por %p80, %p81
      %p83 = scmp.ne.s32.totalorder %s74, %s75
      %p84 = scmp.eq.s32.totalorder %s22, 0
      %p85 = por %p83, %p84
      %p86 = scmp.ne.s32.totalorder %s74, %s75
      %p87 = scmp.eq.s32.totalorder %s23, 1
      %p88 = por %p86, %p87
      %p90 = scmp.ne.s32.totalorder %s75, %s89
      %p91 = scmp.eq.s32.totalorder %s23, 0
      %p92 = por %p90, %p91
      %s94 = sadd.s32 %s93, 1
      %p97 = scmp.eq.s32.totalorder %s17, 1
      %p98 = scmp.ne.s32.totalorder %s93, %s95
      %p99 = scmp.eq.s32.totalorder %s17, 0
      %p100 = por %p98, %p99
      %p101 = scmp.ne.s32.totalorder %s93, %s95
      %p102 = scmp.eq.s32.totalorder %s22, 1
      %p103 = por %p101, %p102
      %p104 = scmp.ne.s32.totalorder %s95, %s96
      %p105 = scmp.eq.s32.totalorder %s22, 0
      %p106 = por %p104, %p105
      %p107 = scmp.ne.s32.totalorder %s95, %s96
      %p108 = scmp.eq.s32.totalorder %s23, 1
      %p109 = por %p107, %p108
      %p111 = scmp.ne.s32.totalorder %s96, %s110
      %p112 = scmp.eq.s32.totalorder %s23, 0
      %p113 = por %p111, %p112
      %s115 = sadd.s32 %s114, 1
      %p118 = scmp.eq.s32.totalorder %s17, 1
      %p119 = scmp.ne.s32.totalorder %s114, %s116
      %p120 = scmp.eq.s32.totalorder %s17, 0
      %p121 = por %p119, %p120
      %p122 = scmp.ne.s32.totalorder %s114, %s116
      %p123 = scmp.eq.s32.totalorder %s22, 1
      %p124 = por %p122, %p123
      %p125 = scmp.ne.s32.totalorder %s116, %s117
      %p126 = scmp.eq.s32.totalorder %s22, 0
      %p127 = por %p125, %p126
      %p128 = scmp.ne.s32.totalorder %s116, %s117
      %p129 = scmp.eq.s32.totalorder %s23, 1
      %p130 = por %p128, %p129
      %p132 = scmp.ne.s32.totalorder %s117, %s131
      %p133 = scmp.eq.s32.totalorder %s23, 0
      %p134 = por %p132, %p133
      %s135 = ssub.s32 %s17, %s24
      %p136 = scmp.eq.s32.totalorder %s135, 0
      %s138 = sadd.s32 %s137, 1
      %s139 = scalar_select %p136, %s137, %s138
      %p142 = pneg %p136
      %p143 = scmp.eq.s32.totalorder %s17, 1
      %p144 = por %p142, %p143
      %p145 = scmp.ne.s32.totalorder %s137, %s140
      %p146 = scmp.eq.s32.totalorder %s17, 0
      %p147 = por %p145, %p146
      %p148 = scmp.ne.s32.totalorder %s137, %s140
      %p149 = scmp.eq.s32.totalorder %s22, 1
      %p150 = por %p148, %p149
      %p151 = scmp.ne.s32.totalorder %s140, %s141
      %p152 = scmp.eq.s32.totalorder %s22, 0
      %p153 = por %p151, %p152
      %p154 = scmp.ne.s32.totalorder %s140, %s141
      %p155 = scmp.eq.s32.totalorder %s23, 1
      %p156 = por %p154, %p155
      %p158 = scmp.ne.s32.totalorder %s141, %s157
      %p159 = scmp.eq.s32.totalorder %s23, 0
      %p160 = por %p158, %p159
      %p161 = scmp.le.s32.totalorder 1, %s17
      %p162 = scmp.lt.s32.totalorder %s17, 3
      %p163 = pnand %p161, %p162
      %p164 = pneg %p163
      // Predicated region
      $region9: #{tpu_custom_call.1} parent=5 // pred_check
        _
      $region10: #{tpu_custom_call.1} parent=5 // pred_check_branch
        %166 = sbr.rel (%p163) target = $region12
      $region11: #{tpu_custom_call.1} parent=5 // pred_region
        %s167 = ssub.s32 %s17, 1
        // Predicated region
        $region13: #{tpu_custom_call.1} parent=11 // pred_check
          %p168 = pneg %p64
        $region14: #{tpu_custom_call.1} parent=11 // pred_check_branch
          %170 = sbr.rel (%p168) target = $region16
        $region15: #{tpu_custom_call.1} parent=11 // pred_region
          _
        $region16: #{tpu_custom_call.1} parent=11 // pred_fallthru
          _
        // Predicated region
        $region17: #{tpu_custom_call.1} parent=11 // pred_check
          %p171 = pneg %p85
        $region18: #{tpu_custom_call.1} parent=11 // pred_check_branch
          %173 = sbr.rel (%p171) target = $region20
        $region19: #{tpu_custom_call.1} parent=11 // pred_region
          _
        $region20: #{tpu_custom_call.1} parent=11 // pred_fallthru
          _
        // Predicated region
        $region21: #{tpu_custom_call.1} parent=11 // pred_check
          %p174 = pneg %p106
        $region22: #{tpu_custom_call.1} parent=11 // pred_check_branch
          %176 = sbr.rel (%p174) target = $region24
        $region23: #{tpu_custom_call.1} parent=11 // pred_region
          _
        $region24: #{tpu_custom_call.1} parent=11 // pred_fallthru
          _
        // Predicated region
        $region25: #{tpu_custom_call.1} parent=11 // pred_check
          %p177 = pneg %p127
        $region26: #{tpu_custom_call.1} parent=11 // pred_check_branch
          %179 = sbr.rel (%p177) target = $region28
        $region27: #{tpu_custom_call.1} parent=11 // pred_region
          _
        $region28: #{tpu_custom_call.1} parent=11 // pred_fallthru
          _
      $region12: #{tpu_custom_call.1} parent=5 // pred_fallthru
        _
      %p180 = scmp.lt.s32.totalorder %s17, 2
      // Predicated region
      $region29: #{tpu_custom_call.1} parent=5 // pred_check
        %p181 = pneg %p180
      $region30: #{tpu_custom_call.1} parent=5 // pred_check_branch
        %183 = sbr.rel (%p181) target = $region32
      $region31: #{tpu_custom_call.1} parent=5 // pred_region
        // Predicated region
        $region33: #{tpu_custom_call.1} parent=31 // pred_check
          %p184 = pneg %p37
        $region34: #{tpu_custom_call.1} parent=31 // pred_check_branch
          %186 = sbr.rel (%p184) target = $region36
        $region35: #{tpu_custom_call.1} parent=31 // pred_region
          %s187 = sand.u32 %s27, 1
          %s188 = scalar_lea.sflag [#allocation3], %s187
          %s189 = sand.u32 %s27, 1
          %s190 = smul.addr %s189, 8
          %s191 = scalar_lea.vmem [#allocation2], %s190
          %s193 = ssub.s32 128, 128
          %194 = vsyncadd %s188, %s193
          %s195 = smul.addr %s17, 2
          %s196 = smul.addr %s195, 64
          %s197 = scalar_lea.hbm %s0, %s196
          %s199 = sshll.u32 %s191, 4
          %s200 = int_to_ptr.vmem [resolvable:$true] %s199
          %202 = dma.hbm_to_vmem [thread:$0]  %s197, 128, %s200, %s188
        $region36: #{tpu_custom_call.1} parent=31 // pred_fallthru
          _
      $region32: #{tpu_custom_call.1} parent=5 // pred_fallthru
        _
      %p203 = scmp.le.s32.totalorder 1, %s17
      %p204 = scmp.lt.s32.totalorder %s17, 3
      %p205 = pnand %p203, %p204
      %p206 = pneg %p205
      // Predicated region
      $region37: #{tpu_custom_call.1} parent=5 // pred_check
        _
      $region38: #{tpu_custom_call.1} parent=5 // pred_check_branch
        %208 = sbr.rel (%p205) target = $region40
      $region39: #{tpu_custom_call.1} parent=5 // pred_region
        %s209 = ssub.s32 %s17, 1
        %s210 = sand.u32 %s30, 1
        %s211 = scalar_lea.sflag [#allocation3], %s210
        %s212 = sand.u32 %s30, 1
        %s213 = smul.addr %s212, 8
        %s214 = scalar_lea.vmem [#allocation2], %s213
        // Predicated region
        $region41: #{tpu_custom_call.1} parent=39 // pred_check
          %p215 = pneg %p43
        $region42: #{tpu_custom_call.1} parent=39 // pred_check_branch
          %217 = sbr.rel (%p215) target = $region44
        $region43: #{tpu_custom_call.1} parent=39 // pred_region
          %218 = dma.done %s211, 128
        $region44: #{tpu_custom_call.1} parent=39 // pred_fallthru
          _
        %s219 = sand.u32 %s30, 1
        %s220 = scalar_lea.sflag [#allocation3], %s219
        %s221 = sand.u32 %s30, 1
        %s222 = smul.addr %s221, 8
        %s223 = scalar_lea.vmem [#allocation2], %s222
        %p224 = pneg %p43
        %p225 = pneg %p40
        %p226 = pneg %p64
        %p227 = pneg %p61
        %p228 = pneg %p85
        %p229 = pneg %p82
        %p230 = pneg %p106
        %p231 = pneg %p103
        %p232 = pneg %p127
        %p233 = pneg %p124
        %p234 = pneg %p153
        %p235 = pneg %p150
        %s236 = sand.u32 %s140, 1
        %s237 = scalar_lea.sflag [#allocation4], %s236
        %s238 = sand.u32 %s140, 1
        %s239 = smul.addr %s238, 8
        %s240 = scalar_lea.vmem [#allocation5], %s239
        %v241 = vld [vmem:[%s214] sm:$0xff]
        %v243 = vcombine.high %v241, %v241
        %vm245 = vcmask 1043456
        %v246 = vsel %vm245, %v241, 0.0
        %v247 = vsel %vm245, %v243, 0.0
        %v248 = vadd.f32 %v246, %v247
        %249 = vadd.xlane.f32.xlu0 %v248
        %v250 = vpop.xlane.xlu0 %249
        %v251 = vmul.f32 %v250, 0.00390625
        %v252 = vld [vmem:[%s1] sm:$0xf]
        %v253 = vld [vmem:[%s2] sm:$0x1]
        %v255 = vlaneseq
        %v256 = vand.u32 %v255, 127
        %v257 = vlaneseq
        %v258 = vshrl.u32 %v257, 7
        %v259 = vsub.s32 %v256, %v258
        %v260 = vrot.slane %v251, %v259
        %vm261 = vcmask 31744
        %v262 = vsel %vm261, %v260, 0
        %v265 = vsel %vm245, %v252, 0
        %267 = vmatprep.subr.mxu0 0.0
        %268 = vmatpush1.msra.mxu0 0.0
        %269 = vmatprep.subr.mxu0 0.0
        %270 = vmatpush1.msra.mxu0 0.0
        %271 = vmatprep.subr.mxu0 0.0
        %272 = vmatpush1.msra.mxu0 0.0
        %273 = vmatprep.subr.mxu0 0.0
        %274 = vmatpush1.msra.mxu0 0.0
        %275 = vmatprep.subr.mxu0 0.0
        %276 = vmatpush1.msra.mxu0 0.0
        %277 = vmatprep.subr.mxu0 0.0
        %278 = vmatpush1.msra.mxu0 0.0
        %279 = vmatprep.subr.mxu0 0.0
        %280 = vmatpush1.msra.mxu0 0.0
        %281 = vmatprep.subr.mxu0 0.0
        %282 = vmatpush1.msra.mxu0 0.0
        %283 = vmatprep.subr.mxu0 0.0
        %284 = vmatpush1.msra.mxu0 0.0
        %285 = vmatprep.subr.mxu0 0.0
        %286 = vmatpush1.msra.mxu0 0.0
        %287 = vmatprep.subr.mxu0 0.0
        %288 = vmatpush1.msra.mxu0 0.0
        %289 = vmatprep.subr.mxu0 0.0
        %290 = vmatpush1.msra.mxu0 0.0
        %291 = vmatprep.subr.mxu0 0.0
        %292 = vmatpush1.msra.mxu0 0.0
        %293 = vmatprep.subr.mxu0 0.0
        %294 = vmatpush1.msra.mxu0 0.0
        %295 = vmatprep.subr.mxu0 0.0
        %296 = vmatpush1.msra.mxu0 0.0
        %297 = vmatprep.subr.mxu0 0.0
        %298 = vmatpush1.msra.mxu0 %v265
        %299 = vmatprep.subr.mxu0 0.0
        %300 = vmatpush2.msra.mxu0 0.0
        %301 = vmatprep.subr.mxu0 0.0
        %302 = vmatpush2.msra.mxu0 0.0
        %303 = vmatprep.subr.mxu0 0.0
        %304 = vmatpush2.msra.mxu0 0.0
        %305 = vmatprep.subr.mxu0 0.0
        %306 = vmatpush2.msra.mxu0 0.0
        %307 = vmatprep.subr.mxu0 0.0
        %308 = vmatpush2.msra.mxu0 0.0
        %309 = vmatprep.subr.mxu0 0.0
        %310 = vmatpush2.msra.mxu0 0.0
        %311 = vmatprep.subr.mxu0 0.0
        %312 = vmatpush2.msra.mxu0 0.0
        %313 = vmatprep.subr.mxu0 0.0
        %314 = vmatpush2.msra.mxu0 0.0
        %315 = vmatprep.subr.mxu0 0.0
        %316 = vmatpush2.msra.mxu0 0.0
        %317 = vmatprep.subr.mxu0 0.0
        %318 = vmatpush2.msra.mxu0 0.0
        %319 = vmatprep.subr.mxu0 0.0
        %320 = vmatpush2.msra.mxu0 0.0
        %321 = vmatprep.subr.mxu0 0.0
        %322 = vmatpush2.msra.mxu0 0.0
        %323 = vmatprep.subr.mxu0 0.0
        %324 = vmatpush2.msra.mxu0 0.0
        %325 = vmatprep.subr.mxu0 0.0
        %326 = vmatpush2.msra.mxu0 0.0
        %327 = vmatprep.subr.mxu0 0.0
        %328 = vmatpush2.msra.mxu0 0.0
        %329 = vmatprep.subr.mxu0 0.0
        %330 = vmatpush2.msra.mxu0 0.0
        %331 = vmatprep.mubr.f32.mxu0 0.0
        %332 = vmatmul.mubr.f32.gmra.mxu0 %v262
        %v333 = vpop.f32.mrf.mxu0
        %v334 = vadd.f32 %v253, %v333
        %v335 = vpop.f32.mrf.mxu0
        %336 = vdwg.mxu0
        %v337 = vmax.f32 %v334, 0.0
        %v338 = vld [vmem:[%s3] sm:$0xff]
        %v339 = vld [vmem:[%s4] sm:$0x1]
        %vm340 = vcmask 64512
        %v342 = vsel %vm340, %v337, 0
        %344 = vmatprep.subr.mxu0 0.0
        %345 = vmatpush1.msra.mxu0 0.0
        %346 = vmatprep.subr.mxu0 0.0
        %347 = vmatpush1.msra.mxu0 0.0
        %348 = vmatprep.subr.mxu0 0.0
        %349 = vmatpush1.msra.mxu0 0.0
        %350 = vmatprep.subr.mxu0 0.0
        %351 = vmatpush1.msra.mxu0 0.0
        %352 = vmatprep.subr.mxu0 0.0
        %353 = vmatpush1.msra.mxu0 0.0
        %354 = vmatprep.subr.mxu0 0.0
        %355 = vmatpush1.msra.mxu0 0.0
        %356 = vmatprep.subr.mxu0 0.0
        %357 = vmatpush1.msra.mxu0 0.0
        %358 = vmatprep.subr.mxu0 0.0
        %359 = vmatpush1.msra.mxu0 0.0
        %360 = vmatprep.subr.mxu0 0.0
        %361 = vmatpush1.msra.mxu0 0.0
        %362 = vmatprep.subr.mxu0 0.0
        %363 = vmatpush1.msra.mxu0 0.0
        %364 = vmatprep.subr.mxu0 0.0
        %365 = vmatpush1.msra.mxu0 0.0
        %366 = vmatprep.subr.mxu0 0.0
        %367 = vmatpush1.msra.mxu0 0.0
        %368 = vmatprep.subr.mxu0 0.0
        %369 = vmatpush1.msra.mxu0 0.0
        %370 = vmatprep.subr.mxu0 0.0
        %371 = vmatpush1.msra.mxu0 0.0
        %372 = vmatprep.subr.mxu0 0.0
        %373 = vmatpush1.msra.mxu0 0.0
        %374 = vmatprep.subr.mxu0 0.0
        %375 = vmatpush1.msra.mxu0 %v338
        %376 = vmatprep.subr.mxu0 0.0
        %377 = vmatpush2.msra.mxu0 0.0
        %378 = vmatprep.subr.mxu0 0.0
        %379 = vmatpush2.msra.mxu0 0.0
        %380 = vmatprep.subr.mxu0 0.0
        %381 = vmatpush2.msra.mxu0 0.0
        %382 = vmatprep.subr.mxu0 0.0
        %383 = vmatpush2.msra.mxu0 0.0
        %384 = vmatprep.subr.mxu0 0.0
        %385 = vmatpush2.msra.mxu0 0.0
        %386 = vmatprep.subr.mxu0 0.0
        %387 = vmatpush2.msra.mxu0 0.0
        %388 = vmatprep.subr.mxu0 0.0
        %389 = vmatpush2.msra.mxu0 0.0
        %390 = vmatprep.subr.mxu0 0.0
        %391 = vmatpush2.msra.mxu0 0.0
        %392 = vmatprep.subr.mxu0 0.0
        %393 = vmatpush2.msra.mxu0 0.0
        %394 = vmatprep.subr.mxu0 0.0
        %395 = vmatpush2.msra.mxu0 0.0
        %396 = vmatprep.subr.mxu0 0.0
        %397 = vmatpush2.msra.mxu0 0.0
        %398 = vmatprep.subr.mxu0 0.0
        %399 = vmatpush2.msra.mxu0 0.0
        %400 = vmatprep.subr.mxu0 0.0
        %401 = vmatpush2.msra.mxu0 0.0
        %402 = vmatprep.subr.mxu0 0.0
        %403 = vmatpush2.msra.mxu0 0.0
        %404 = vmatprep.subr.mxu0 0.0
        %405 = vmatpush2.msra.mxu0 0.0
        %406 = vmatprep.subr.mxu0 0.0
        %407 = vmatpush2.msra.mxu0 0.0
        %408 = vmatprep.mubr.f32.mxu0 0.0
        %409 = vmatmul.mubr.f32.gmra.mxu0 %v342
        %v410 = vpop.f32.mrf.mxu0
        %v411 = vadd.f32 %v339, %v410
        %v412 = vpop.f32.mrf.mxu0
        %413 = vdwg.mxu0
        %v414 = vxor.u32 %v411, 2147483648
        %v415 = vmul.f32 %v414, 1.442695
        %v416 = vpow.pop %v415
        %v417 = vadd.f32 %v416, 1.0
        %v418 = vrcp.pop %v417
        %v419 = vmul.f32 1.0, %v418
        %v420 = vlaneseq
        %v421 = vshrl.u32 %v420, 7
        %v422 = vsub.s32 0, %v421
        %v423 = vrot.slane %v419, %v422
        %425 = vbcast.lane.b32.xlu0 %v423, 256
        %v426 = vpop.permute.xlu0 %425
        %v429 = vunpack.c.l.s4 839922192
        %v430 = vunpack.c.0.s8 %v429
        %v431 = vlaneseq
        %v432 = vshrl.u32 %v431, 7
        %v433 = vsub.s32 %v430, %v432
        %v434 = vrot.slane %v426, %v433
        %v436 = vmul.f32 %v241, %v434
        %437 = vst [vmem:[%s240] sm:$0xff] %v436
        %s438 = sand.u32 %s140, 1
        %s439 = scalar_lea.sflag [#allocation4], %s438
        %s440 = sand.u32 %s140, 1
        %s441 = smul.addr %s440, 8
        %s442 = scalar_lea.vmem [#allocation5], %s441
        // Predicated region
        $region45: #{tpu_custom_call.1} parent=39 // pred_check
          %p443 = pneg %p150
        $region46: #{tpu_custom_call.1} parent=39 // pred_check_branch
          %445 = sbr.rel (%p443) target = $region48
        $region47: #{tpu_custom_call.1} parent=39 // pred_region
          %s447 = ssub.s32 128, 128
          %448 = vsyncadd %s439, %s447
          %s449 = smul.addr %s22, 2
          %s450 = smul.addr %s449, 64
          %s451 = scalar_lea.hbm %s5, %s450
          %s453 = sshll.u32 %s442, 4
          %s454 = int_to_ptr.vmem [resolvable:$true] %s453
          %456 = dma.vmem_to_hbm [thread:$0]  %s454, 128, %s451, %s439
        $region48: #{tpu_custom_call.1} parent=39 // pred_fallthru
          _
      $region40: #{tpu_custom_call.1} parent=5 // pred_fallthru
        _
      %p457 = scmp.le.s32.totalorder 2, %s17
      // Predicated region
      $region49: #{tpu_custom_call.1} parent=5 // pred_check
        %p458 = pneg %p457
      $region50: #{tpu_custom_call.1} parent=5 // pred_check_branch
        %460 = sbr.rel (%p458) target = $region52
      $region51: #{tpu_custom_call.1} parent=5 // pred_region
        %s461 = ssub.s32 %s17, 2
        // Predicated region
        $region53: #{tpu_custom_call.1} parent=51 // pred_check
          %p462 = pneg %p156
        $region54: #{tpu_custom_call.1} parent=51 // pred_check_branch
          %464 = sbr.rel (%p462) target = $region56
        $region55: #{tpu_custom_call.1} parent=51 // pred_region
          %s465 = sand.u32 %s141, 1
          %s466 = scalar_lea.sflag [#allocation4], %s465
          %s467 = sand.u32 %s141, 1
          %s468 = smul.addr %s467, 8
          %s469 = scalar_lea.vmem [#allocation5], %s468
          %470 = dma.done %s466, 128
        $region56: #{tpu_custom_call.1} parent=51 // pred_fallthru
          _
      $region52: #{tpu_custom_call.1} parent=5 // pred_fallthru
        _
    $region6: #{tpu_custom_call.1} parent=1 // loop_footer
      %s21 = sadd.s32 1, %s17
    $region7: #{tpu_custom_call.1} parent=1 // loop_footer_branch
      %16 = sbr.rel target = $region3
    $region8: #{tpu_custom_call.1} parent=1 // loop_exit
      _
    %471 = vsyncpa [#allocation3], 1
    %s472 = scalar_lea.sflag [#allocation3], 1
    %473 = vsyncpa %s472, 1
    %474 = vsyncpa [#allocation4], 1
    %s475 = scalar_lea.sflag [#allocation4], 1
    %476 = vsyncpa %s475, 1

</llo_original>
